<compile_context>
chip_gen: v5e
topology: v5e:2x2
jax: 0.10.0
libtpu: 0.0.40
codegen_flags: <defaults>
</compile_context>

<pallas_src>
import functools

import jax
import jax.numpy as jnp
from jax.experimental import pallas as pl
from jax.experimental.pallas import tpu as pltpu

EPS = 1e-5


def mfa_kernel(xf_ref, x1_ref, x2_ref, wa_ref, wb_ref, gb_ref, out_ref,
               sum_ref, sumsq_ref, *, inv_nl, mxu_dtype):
    """Per-sample tiles: xf/x1/x2:(C,L)  wa/wb:(3C,C)  gb:(C,2)  out:(C,L)."""
    phase = pl.program_id(0)      # 0: accumulate BN stats, 1: normalize+write
    n = pl.program_id(1)          # sample index
    C, L = xf_ref.shape

    xf = xf_ref[...]
    g1 = xf * x1_ref[...]
    g2 = xf * x2_ref[...]

    # Conv1d(2C->C, k=3, pad=1) as two tap-stacked MXU matmuls (no channel
    # concat): rows of wa/wb are [W_k0; W_k1; W_k2] for each input half.
    p = (jnp.dot(wa_ref[...].astype(mxu_dtype), g1.astype(mxu_dtype),
                 preferred_element_type=jnp.float32)
         + jnp.dot(wb_ref[...].astype(mxu_dtype), g2.astype(mxu_dtype),
                   preferred_element_type=jnp.float32))            # (3C, L)
    p0, p1, p2 = p[:C], p[C:2 * C], p[2 * C:]

    # y[l] = P0[l-1] + P1[l] + P2[l+1] via XLU lane rolls; the wrapped lanes
    # land exactly on the masked boundary positions, so this is exact.
    pos = jax.lax.broadcasted_iota(jnp.int32, (C, L), 1)
    y = (p1
         + jnp.where(pos == 0, 0.0, pltpu.roll(p0, shift=1, axis=1))
         + jnp.where(pos == L - 1, 0.0, pltpu.roll(p2, shift=L - 1, axis=1)))
    # Conv bias omitted: training-mode BN subtracts the per-channel mean right
    # after, so the bias cancels exactly.

    @pl.when(phase == 0)
    def _():
        @pl.when(n == 0)
        def _():
            sum_ref[...] = jnp.zeros_like(sum_ref)
            sumsq_ref[...] = jnp.zeros_like(sumsq_ref)
        sum_ref[...] += jnp.sum(y, axis=1, keepdims=True)
        sumsq_ref[...] += jnp.sum(y * y, axis=1, keepdims=True)

    @pl.when(phase == 1)
    def _():
        @pl.when(n == 0)
        def _():
            # Fold BN into a single per-channel affine: y * a + b.
            mean = sum_ref[...] * inv_nl
            var = jnp.maximum(sumsq_ref[...] * inv_nl - mean * mean, 0.0)
            a = jax.lax.rsqrt(var + EPS) * gb_ref[:, 0:1]
            sum_ref[...] = a                              # scratch reuse: scale
            sumsq_ref[...] = gb_ref[:, 1:2] - mean * a    # scratch reuse: offset
        out_ref[...] = jnp.maximum(xf + y * sum_ref[...] + sumsq_ref[...], 0.0)


def mfa_forward(x_ful, x1, x2, params, *, mxu_dtype=None):
    N, C, L = x_ful.shape
    w, gamma, beta = params["w"], params["gamma"], params["beta"]

    # bf16 MXU operands only pay off once the contraction dim fills an MXU
    # granule; default to f32 for small C (and always correct on v5e).
    if mxu_dtype is None:
        mxu_dtype = jnp.bfloat16 if 2 * C >= 128 else jnp.float32

    # Tap-stacked weights, split per concatenated input half (avoids an
    # in-kernel channel concat): wa acts on x_ful*x1, wb on x_ful*x2.
    w_stack = jnp.transpose(w, (2, 0, 1)).reshape(3 * C, 2 * C)   # [W0;W1;W2]
    wa, wb = w_stack[:, :C], w_stack[:, C:]
    gb = jnp.stack([gamma, beta], axis=1)                          # (C, 2)

    x_spec = pl.BlockSpec((None, C, L), lambda p, n: (n, 0, 0))
    w_spec = pl.BlockSpec((3 * C, C), lambda p, n: (0, 0))
    gb_spec = pl.BlockSpec((C, 2), lambda p, n: (0, 0))
    # Output block index stays at 0 during the stats phase (nothing written
    # back) and follows the sample index during the normalize phase, so each
    # output block is written to HBM exactly once.
    out_spec = pl.BlockSpec((None, C, L), lambda p, n: (n * p, 0, 0))

    return pl.pallas_call(
        functools.partial(mfa_kernel, inv_nl=1.0 / (N * L),
                          mxu_dtype=mxu_dtype),
        out_shape=jax.ShapeDtypeStruct((N, C, L), jnp.float32),
        grid=(2, N),
        in_specs=[x_spec, x_spec, x_spec, w_spec, w_spec, gb_spec],
        out_specs=out_spec,
        scratch_shapes=[pltpu.VMEM((C, 1), jnp.float32),
                        pltpu.VMEM((C, 1), jnp.float32)],
        compiler_params=pltpu.CompilerParams(
            # Both grid axes carry the BN sum/sumsq dependency through scratch.
            dimension_semantics=("arbitrary", "arbitrary")),
    )(x_ful, x1, x2, wa, wb, gb)


def mfa_ref(x_ful, x1, x2, params):
    """Pure-JAX reference (lax conv + training-mode batch-norm)."""
    w, b, gamma, beta = params["w"], params["b"], params["gamma"], params["beta"]
    xcat = jnp.concatenate([x_ful * x1, x_ful * x2], axis=1)      # (N, 2C, L)
    y = jax.lax.conv_general_dilated(
        xcat, w, window_strides=(1,), padding=((1, 1),),
        dimension_numbers=("NCH", "OIH", "NCH"))
    y = y + b[None, :, None]
    mean = jnp.mean(y, axis=(0, 2), keepdims=True)
    var = jnp.var(y, axis=(0, 2), keepdims=True)
    y = (y - mean) / jnp.sqrt(var + EPS)
    y = y * gamma[None, :, None] + beta[None, :, None]
    return jnp.maximum(x_ful + y, 0.0)


if __name__ == "__main__":
    N, C, L = 2, 8, 128   # in_dim = 8
    key = jax.random.PRNGKey(0)
    ks = jax.random.split(key, 5)

    x_ful = jax.random.normal(ks[0], (N, C, L), jnp.float32)
    x1 = jax.random.normal(ks[1], (N, C, L), jnp.float32)
    x2 = jax.random.normal(ks[2], (N, C, L), jnp.float32)

    # Deterministic Conv1d(2C -> C, k=3) params (PyTorch-style uniform init).
    fan_in = 2 * C * 3
    bound = 1.0 / (fan_in ** 0.5)
    w = jax.random.uniform(ks[3], (C, 2 * C, 3), jnp.float32, -bound, bound)
    b = jax.random.uniform(ks[4], (C,), jnp.float32, -bound, bound)
    gamma = jnp.ones((C,), jnp.float32)   # BatchNorm default weight
    beta = jnp.zeros((C,), jnp.float32)   # BatchNorm default bias
    params = dict(w=w, b=b, gamma=gamma, beta=beta)

    ref = mfa_ref(x_ful, x1, x2, params)

    # Default path is all-f32 (tap fusion, bias drop, roll-shift and folded BN
    # are exact rewrites), so it must match the reference tightly.
    out = mfa_forward(x_ful, x1, x2, params)
    jax.block_until_ready(out)
    max_err = float(jnp.max(jnp.abs(out - ref)))
    assert jnp.allclose(out, ref, atol=1e-4, rtol=1e-4), f"max_err={max_err}"

    print("KERNEL_OK")
</pallas_src>

<mosaic_0001>
module attributes {stable_mosaic.version = 11 : i64} {
  func.func @mfa_kernel(%arg0: i32, %arg1: i32, %arg2: memref<1x8x128xf32, #tpu.memory_space<vmem>>, %arg3: memref<1x8x128xf32, #tpu.memory_space<vmem>>, %arg4: memref<1x8x128xf32, #tpu.memory_space<vmem>>, %arg5: memref<24x8xf32, #tpu.memory_space<vmem>>, %arg6: memref<24x8xf32, #tpu.memory_space<vmem>>, %arg7: memref<8x2xf32, #tpu.memory_space<vmem>>, %arg8: memref<1x8x128xf32, #tpu.memory_space<vmem>>, %arg9: memref<8x1xf32, #tpu.memory_space<vmem>>, %arg10: memref<8x1xf32, #tpu.memory_space<vmem>>) attributes {dimension_semantics = [#tpu.dimension_semantics<arbitrary>, #tpu.dimension_semantics<arbitrary>], iteration_bounds = array<i64: 2, 2>, scalar_prefetch = 0 : i64, scratch_operands = 2 : i64, tpu.core_type = #tpu.core_type<tc>, window_params = [{transform_indices = @transform_0, window_bounds = array<i64: 1, 8, 128>}, {transform_indices = @transform_1, window_bounds = array<i64: 1, 8, 128>}, {transform_indices = @transform_2, window_bounds = array<i64: 1, 8, 128>}, {pipeline_mode = #tpu.pipeline_mode<synchronous>, transform_indices = @transform_3, window_bounds = array<i64: 24, 8>}, {pipeline_mode = #tpu.pipeline_mode<synchronous>, transform_indices = @transform_4, window_bounds = array<i64: 24, 8>}, {pipeline_mode = #tpu.pipeline_mode<synchronous>, transform_indices = @transform_5, window_bounds = array<i64: 8, 2>}, {transform_indices = @transform_6, window_bounds = array<i64: 1, 8, 128>}]} {
    %c0 = arith.constant 0 : index
    %c0_0 = arith.constant 0 : index
    %c0_1 = arith.constant 0 : index
    %0 = vector.load %arg2[%c0, %c0_0, %c0_1] : memref<1x8x128xf32, #tpu.memory_space<vmem>>, vector<1x8x128xf32>
    %1 = vector.shape_cast %0 : vector<1x8x128xf32> to vector<8x128xf32>
    %c0_2 = arith.constant 0 : index
    %c0_3 = arith.constant 0 : index
    %c0_4 = arith.constant 0 : index
    %2 = vector.load %arg3[%c0_2, %c0_3, %c0_4] : memref<1x8x128xf32, #tpu.memory_space<vmem>>, vector<1x8x128xf32>
    %3 = vector.shape_cast %2 : vector<1x8x128xf32> to vector<8x128xf32>
    %4 = arith.mulf %1, %3 : vector<8x128xf32>
    %c0_5 = arith.constant 0 : index
    %c0_6 = arith.constant 0 : index
    %c0_7 = arith.constant 0 : index
    %5 = vector.load %arg4[%c0_5, %c0_6, %c0_7] : memref<1x8x128xf32, #tpu.memory_space<vmem>>, vector<1x8x128xf32>
    %6 = vector.shape_cast %5 : vector<1x8x128xf32> to vector<8x128xf32>
    %7 = arith.mulf %1, %6 : vector<8x128xf32>
    %c0_8 = arith.constant 0 : index
    %c0_9 = arith.constant 0 : index
    %8 = vector.load %arg5[%c0_8, %c0_9] : memref<24x8xf32, #tpu.memory_space<vmem>>, vector<24x8xf32>
    %cst = arith.constant dense<0.000000e+00> : vector<24x128xf32>
    %9 = tpu.matmul %8, %4, %cst {dimension_numbers = #tpu.dot_dimension_numbers<[1], [0], [0], [1], [0, 0, 1, 1], [], []>} : vector<24x8xf32>, vector<8x128xf32>, vector<24x128xf32> -> vector<24x128xf32>
    %c0_10 = arith.constant 0 : index
    %c0_11 = arith.constant 0 : index
    %10 = vector.load %arg6[%c0_10, %c0_11] : memref<24x8xf32, #tpu.memory_space<vmem>>, vector<24x8xf32>
    %cst_12 = arith.constant dense<0.000000e+00> : vector<24x128xf32>
    %11 = tpu.matmul %10, %7, %cst_12 {dimension_numbers = #tpu.dot_dimension_numbers<[1], [0], [0], [1], [0, 0, 1, 1], [], []>} : vector<24x8xf32>, vector<8x128xf32>, vector<24x128xf32> -> vector<24x128xf32>
    %12 = arith.addf %9, %11 : vector<24x128xf32>
    %13 = vector.extract_strided_slice %12 {offsets = [0, 0], sizes = [8, 128], strides = [1, 1]} : vector<24x128xf32> to vector<8x128xf32>
    %14 = vector.extract_strided_slice %12 {offsets = [8, 0], sizes = [8, 128], strides = [1, 1]} : vector<24x128xf32> to vector<8x128xf32>
    %15 = vector.extract_strided_slice %12 {offsets = [16, 0], sizes = [8, 128], strides = [1, 1]} : vector<24x128xf32> to vector<8x128xf32>
    %16 = tpu.iota {dimensions = array<i32: 1>} : vector<8x128xi32>
    %c0_i32 = arith.constant 0 : i32
    %17 = vector.broadcast %c0_i32 : i32 to vector<8x128xi32>
    %18 = arith.cmpi eq, %16, %17 : vector<8x128xi32>
    %c1_i32 = arith.constant 1 : i32
    %19 = tpu.dynamic_rotate %13 by %c1_i32 dim 1 : vector<8x128xf32>, i32 -> vector<8x128xf32>
    %cst_13 = arith.constant 0.000000e+00 : f32
    %20 = vector.broadcast %cst_13 : f32 to vector<8x128xf32>
    %21 = arith.select %18, %20, %19 : vector<8x128xi1>, vector<8x128xf32>
    %22 = arith.addf %14, %21 : vector<8x128xf32>
    %c127_i32 = arith.constant 127 : i32
    %23 = vector.broadcast %c127_i32 : i32 to vector<8x128xi32>
    %24 = arith.cmpi eq, %16, %23 : vector<8x128xi32>
    %c127_i32_14 = arith.constant 127 : i32
    %25 = tpu.dynamic_rotate %15 by %c127_i32_14 dim 1 : vector<8x128xf32>, i32 -> vector<8x128xf32>
    %cst_15 = arith.constant 0.000000e+00 : f32
    %26 = vector.broadcast %cst_15 : f32 to vector<8x128xf32>
    %27 = arith.select %24, %26, %25 : vector<8x128xi1>, vector<8x128xf32>
    %28 = arith.addf %22, %27 : vector<8x128xf32>
    %c0_i32_16 = arith.constant 0 : i32
    %29 = arith.cmpi eq, %arg0, %c0_i32_16 : i32
    %30 = arith.extui %29 : i1 to i32
    %c0_i32_17 = arith.constant 0 : i32
    %31 = arith.cmpi ne, %30, %c0_i32_17 : i32
    scf.if %31 {
      %c0_i32_20 = arith.constant 0 : i32
      %35 = arith.cmpi eq, %arg1, %c0_i32_20 : i32
      %36 = arith.extui %35 : i1 to i32
      %c0_i32_21 = arith.constant 0 : i32
      %37 = arith.cmpi ne, %36, %c0_i32_21 : i32
      scf.if %37 {
        %cst_32 = arith.constant 0.000000e+00 : f32
        %49 = vector.broadcast %cst_32 : f32 to vector<8x1xf32>
        %c0_33 = arith.constant 0 : index
        %c0_34 = arith.constant 0 : index
        %50 = vector.load %arg9[%c0_33, %c0_34] : memref<8x1xf32, #tpu.memory_space<vmem>>, vector<8x1xf32>
        tpu.vector_store %arg9[%c0_33, %c0_34], %49 {strides = array<i32>} : memref<8x1xf32, #tpu.memory_space<vmem>>, vector<8x1xf32>,
        %cst_35 = arith.constant 0.000000e+00 : f32
        %51 = vector.broadcast %cst_35 : f32 to vector<8x1xf32>
        %c0_36 = arith.constant 0 : index
        %c0_37 = arith.constant 0 : index
        %52 = vector.load %arg10[%c0_36, %c0_37] : memref<8x1xf32, #tpu.memory_space<vmem>>, vector<8x1xf32>
        tpu.vector_store %arg10[%c0_36, %c0_37], %51 {strides = array<i32>} : memref<8x1xf32, #tpu.memory_space<vmem>>, vector<8x1xf32>,
      } else {
      }
      %c0_22 = arith.constant 0 : index
      %c0_23 = arith.constant 0 : index
      %38 = vector.load %arg9[%c0_22, %c0_23] : memref<8x1xf32, #tpu.memory_space<vmem>>, vector<8x1xf32>
      %cst_24 = arith.constant dense<0.000000e+00> : vector<8xf32>
      %39 = vector.multi_reduction <add>, %28, %cst_24 [1] : vector<8x128xf32> to vector<8xf32>
      %40 = vector.shape_cast %39 : vector<8xf32> to vector<8x1xf32>
      %41 = arith.addf %38, %40 : vector<8x1xf32>
      %c0_25 = arith.constant 0 : index
      %c0_26 = arith.constant 0 : index
      %42 = vector.load %arg9[%c0_25, %c0_26] : memref<8x1xf32, #tpu.memory_space<vmem>>, vector<8x1xf32>
      tpu.vector_store %arg9[%c0_25, %c0_26], %41 {strides = array<i32>} : memref<8x1xf32, #tpu.memory_space<vmem>>, vector<8x1xf32>,
      %c0_27 = arith.constant 0 : index
      %c0_28 = arith.constant 0 : index
      %43 = vector.load %arg10[%c0_27, %c0_28] : memref<8x1xf32, #tpu.memory_space<vmem>>, vector<8x1xf32>
      %44 = arith.mulf %28, %28 : vector<8x128xf32>
      %cst_29 = arith.constant dense<0.000000e+00> : vector<8xf32>
      %45 = vector.multi_reduction <add>, %44, %cst_29 [1] : vector<8x128xf32> to vector<8xf32>
      %46 = vector.shape_cast %45 : vector<8xf32> to vector<8x1xf32>
      %47 = arith.addf %43, %46 : vector<8x1xf32>
      %c0_30 = arith.constant 0 : index
      %c0_31 = arith.constant 0 : index
      %48 = vector.load %arg10[%c0_30, %c0_31] : memref<8x1xf32, #tpu.memory_space<vmem>>, vector<8x1xf32>
      tpu.vector_store %arg10[%c0_30, %c0_31], %47 {strides = array<i32>} : memref<8x1xf32, #tpu.memory_space<vmem>>, vector<8x1xf32>,
    } else {
    }
    %c1_i32_18 = arith.constant 1 : i32
    %32 = arith.cmpi eq, %arg0, %c1_i32_18 : i32
    %33 = arith.extui %32 : i1 to i32
    %c0_i32_19 = arith.constant 0 : i32
    %34 = arith.cmpi ne, %33, %c0_i32_19 : i32
    scf.if %34 {
      %c0_i32_20 = arith.constant 0 : i32
      %35 = arith.cmpi eq, %arg1, %c0_i32_20 : i32
      %36 = arith.extui %35 : i1 to i32
      %c0_i32_21 = arith.constant 0 : i32
      %37 = arith.cmpi ne, %36, %c0_i32_21 : i32
      scf.if %37 {
        %c0_30 = arith.constant 0 : index
        %c0_31 = arith.constant 0 : index
        %50 = vector.load %arg9[%c0_30, %c0_31] : memref<8x1xf32, #tpu.memory_space<vmem>>, vector<8x1xf32>
        %cst_32 = arith.constant 3.906250e-03 : f32
        %51 = vector.broadcast %cst_32 : f32 to vector<8x1xf32>
        %52 = arith.mulf %50, %51 : vector<8x1xf32>
        %c0_33 = arith.constant 0 : index
        %c0_34 = arith.constant 0 : index
        %53 = vector.load %arg10[%c0_33, %c0_34] : memref<8x1xf32, #tpu.memory_space<vmem>>, vector<8x1xf32>
        %cst_35 = arith.constant 3.906250e-03 : f32
        %54 = vector.broadcast %cst_35 : f32 to vector<8x1xf32>
        %55 = arith.mulf %53, %54 : vector<8x1xf32>
        %56 = arith.mulf %52, %52 : vector<8x1xf32>
        %57 = arith.subf %55, %56 : vector<8x1xf32>
        %cst_36 = arith.constant 0.000000e+00 : f32
        %58 = vector.broadcast %cst_36 : f32 to vector<8x1xf32>
        %59 = arith.maximumf %57, %58 : vector<8x1xf32>
        %cst_37 = arith.constant 9.99999974E-6 : f32
        %60 = vector.broadcast %cst_37 : f32 to vector<8x1xf32>
        %61 = arith.addf %59, %60 : vector<8x1xf32>
        %62 = math.rsqrt %61 : vector<8x1xf32>
        %c0_38 = arith.constant 0 : index
        %c0_39 = arith.constant 0 : index
        %63 = vector.load %arg7[%c0_38, %c0_39] : memref<8x2xf32, #tpu.memory_space<vmem>>, vector<8x1xf32>
        %64 = arith.mulf %62, %63 : vector<8x1xf32>
        %c0_40 = arith.constant 0 : index
        %c0_41 = arith.constant 0 : index
        %65 = vector.load %arg9[%c0_40, %c0_41] : memref<8x1xf32, #tpu.memory_space<vmem>>, vector<8x1xf32>
        tpu.vector_store %arg9[%c0_40, %c0_41], %64 {strides = array<i32>} : memref<8x1xf32, #tpu.memory_space<vmem>>, vector<8x1xf32>,
        %c0_42 = arith.constant 0 : index
        %c1 = arith.constant 1 : index
        %66 = vector.load %arg7[%c0_42, %c1] : memref<8x2xf32, #tpu.memory_space<vmem>>, vector<8x1xf32>
        %67 = arith.mulf %52, %64 : vector<8x1xf32>
        %68 = arith.subf %66, %67 : vector<8x1xf32>
        %c0_43 = arith.constant 0 : index
        %c0_44 = arith.constant 0 : index
        %69 = vector.load %arg10[%c0_43, %c0_44] : memref<8x1xf32, #tpu.memory_space<vmem>>, vector<8x1xf32>
        tpu.vector_store %arg10[%c0_43, %c0_44], %68 {strides = array<i32>} : memref<8x1xf32, #tpu.memory_space<vmem>>, vector<8x1xf32>,
      } else {
      }
      %c0_22 = arith.constant 0 : index
      %c0_23 = arith.constant 0 : index
      %38 = vector.load %arg9[%c0_22, %c0_23] : memref<8x1xf32, #tpu.memory_space<vmem>>, vector<8x1xf32>
      %39 = vector.broadcast %38 : vector<8x1xf32> to vector<8x128xf32>
      %40 = arith.mulf %28, %39 : vector<8x128xf32>
      %41 = arith.addf %1, %40 : vector<8x128xf32>
      %c0_24 = arith.constant 0 : index
      %c0_25 = arith.constant 0 : index
      %42 = vector.load %arg10[%c0_24, %c0_25] : memref<8x1xf32, #tpu.memory_space<vmem>>, vector<8x1xf32>
      %43 = vector.broadcast %42 : vector<8x1xf32> to vector<8x128xf32>
      %44 = arith.addf %41, %43 : vector<8x128xf32>
      %cst_26 = arith.constant 0.000000e+00 : f32
      %45 = vector.broadcast %cst_26 : f32 to vector<8x128xf32>
      %46 = arith.maximumf %44, %45 : vector<8x128xf32>
      %c0_27 = arith.constant 0 : index
      %c0_28 = arith.constant 0 : index
      %c0_29 = arith.constant 0 : index
      %47 = vector.load %arg8[%c0_27, %c0_28, %c0_29] : memref<1x8x128xf32, #tpu.memory_space<vmem>>, vector<1x8x128xf32>
      %48 = vector.shape_cast %47 : vector<1x8x128xf32> to vector<8x128xf32>
      %49 = vector.shape_cast %46 : vector<8x128xf32> to vector<1x8x128xf32>
      tpu.vector_store %arg8[%c0_27, %c0_28, %c0_29], %49 {strides = array<i32>} : memref<1x8x128xf32, #tpu.memory_space<vmem>>, vector<1x8x128xf32>,
    } else {
    }
    return
  }
  func.func @transform_0(%arg0: i32, %arg1: i32) -> (i32, i32, i32) {
    %c0_i32 = arith.constant 0 : i32
    %c0_i32_0 = arith.constant 0 : i32
    %c0_i32_1 = arith.constant 0 : i32
    return %arg1, %c0_i32, %c0_i32_0 : i32, i32, i32
  }
  func.func @transform_1(%arg0: i32, %arg1: i32) -> (i32, i32, i32) {
    %c0_i32 = arith.constant 0 : i32
    %c0_i32_0 = arith.constant 0 : i32
    %c0_i32_1 = arith.constant 0 : i32
    return %arg1, %c0_i32, %c0_i32_0 : i32, i32, i32
  }
  func.func @transform_2(%arg0: i32, %arg1: i32) -> (i32, i32, i32) {
    %c0_i32 = arith.constant 0 : i32
    %c0_i32_0 = arith.constant 0 : i32
    %c0_i32_1 = arith.constant 0 : i32
    return %arg1, %c0_i32, %c0_i32_0 : i32, i32, i32
  }
  func.func @transform_3(%arg0: i32, %arg1: i32) -> (i32, i32) {
    %c0_i32 = arith.constant 0 : i32
    %c0_i32_0 = arith.constant 0 : i32
    %c0_i32_1 = arith.constant 0 : i32
    return %c0_i32, %c0_i32_0 : i32, i32
  }
  func.func @transform_4(%arg0: i32, %arg1: i32) -> (i32, i32) {
    %c0_i32 = arith.constant 0 : i32
    %c0_i32_0 = arith.constant 0 : i32
    %c0_i32_1 = arith.constant 0 : i32
    return %c0_i32, %c0_i32_0 : i32, i32
  }
  func.func @transform_5(%arg0: i32, %arg1: i32) -> (i32, i32) {
    %c0_i32 = arith.constant 0 : i32
    %c0_i32_0 = arith.constant 0 : i32
    %c0_i32_1 = arith.constant 0 : i32
    return %c0_i32, %c0_i32_0 : i32, i32
  }
  func.func @transform_6(%arg0: i32, %arg1: i32) -> (i32, i32, i32) {
    %0 = arith.muli %arg1, %arg0 : i32
    %c0_i32 = arith.constant 0 : i32
    %c0_i32_0 = arith.constant 0 : i32
    %c0_i32_1 = arith.constant 0 : i32
    return %0, %c0_i32, %c0_i32_0 : i32, i32, i32
  }
}

</mosaic_0001>

<llo_original>
// kernel: tpu_custom_call.1
$region0: #{tpu_custom_call.1}
  #allocation0 [shape = 'u32[]', space=smem, size = 0x4, offset = 0x4, fixed_abs, tag = 'smem constant byte address 0x4 - core index']
  #allocation1 [shape = 'u32[72,128]{1,0:T(1,128)}', space=vmem, size = 0x9000, scoped, tag = 'internal scratch']
  #allocation2 [shape = 'f32[8,1]{1,0:T(8,128)}', space=vmem, size = 0x1000, scoped, tag = 'scratch operand']
  #allocation3 [shape = 'f32[8,1]{1,0:T(8,128)}', space=vmem, size = 0x1000, scoped, tag = 'scratch operand']
  %s0 = inlined_call_operand.vmem [shape: f32[2,8,128], index: 0, kind: input, shape index: {}]
  %s1 = inlined_call_operand.vmem [shape: f32[2,8,128], index: 1, kind: input, shape index: {}]
  %s2 = inlined_call_operand.vmem [shape: f32[2,8,128], index: 2, kind: input, shape index: {}]
  %s3 = inlined_call_operand.vmem [shape: f32[24,8], index: 3, kind: input, shape index: {}]
  %s4 = inlined_call_operand.vmem [shape: f32[24,8], index: 4, kind: input, shape index: {}]
  %s5 = inlined_call_operand.vmem [shape: f32[8,2], index: 5, kind: input, shape index: {}]
  %s6 = inlined_call_operand.hbm [shape: f32[2,8,128], index: 6, kind: output, shape index: {}]
  %s7 = sld [smem:[#allocation0]]
  $region73: #{tpu_custom_call.1} parent=0
    _
  %s9 = ssub.s32 1, %s7
  %s10 = scalar_select 0, %s9, %s7
  $region1: #{tpu_custom_call.1} parent=0
    #allocation4 [shape = 'u8[8192]{0}', space=vmem, size = 0x2000, scoped, tag = 'output window, operand 0']
    #allocation5 [shape = 's32[2]{0}', space=sflag, size = 0x8, scoped, tag = 'scoped memory for tpu_custom_call.1']
    %11 = vsyncpa [#allocation5], 0
    %s12 = scalar_lea.sflag [#allocation5], 1
    %13 = vsyncpa %s12, 0
    loop: start=0, step=1, limit=6
    $region2: #{tpu_custom_call.1} parent=1 // loop_pre_header
      _
    $region3: #{tpu_custom_call.1} parent=1 // loop_header
      %s15 = sphi 0, %s19
      %p16 = scmp.ge.s32.totalorder %s15, 6
      %s22 = sphi 0, %s34
      %s23 = sphi 0, %s30
      %s24 = sphi 0, %s22
      %s25 = sphi 0, %s23
      %s26 = sphi 0, %s24
      %s27 = sphi 0, %s25
      %s37 = sphi 0, %s39
      %s40 = sphi 0, %s37
      %s41 = sphi 0, %s40
      %s57 = sphi 0, %s41
      %s63 = sphi 0, %s65
      %s66 = sphi 0, %s63
      %s67 = sphi 0, %s66
      %s83 = sphi 0, %s67
      %s89 = sphi 0, %s91
      %s92 = sphi 0, %s89
      %s93 = sphi 0, %s92
      %s109 = sphi 0, %s93
      %s113 = sphi 0, %s113
      %s115 = sphi 0, %s113
      %s116 = sphi 0, %s115
      %s130 = sphi 0, %s116
      %s134 = sphi 0, %s134
      %s136 = sphi 0, %s134
      %s137 = sphi 0, %s136
      %s151 = sphi 0, %s137
      %s155 = sphi 0, %s155
      %s157 = sphi 0, %s155
      %s158 = sphi 0, %s157
      %s172 = sphi 0, %s158
      %s180 = sphi 0, %s182
      %s183 = sphi 0, %s180
      %s184 = sphi 0, %s183
      %s200 = sphi 0, %s184
    $region4: #{tpu_custom_call.1} parent=1 // loop_header_branch
      %18 = sbr.rel (%p16) target = $region8
    $region5: #{tpu_custom_call.1} parent=1 // loop_body
      %s20 = ssub.s32 %s15, 1
      %s21 = ssub.s32 %s15, 2
      %s28 = sadd.s32 1, %s23
      %p29 = scmp.ge.s32.totalorder %s28, 2
      %s30 = scalar_select %p29, 0, %s28
      %s31 = sadd.s32 1, %s22
      %s32 = scalar_select %p29, %s31, %s22
      %p33 = scmp.ge.s32.totalorder %s32, 2
      %s34 = scalar_select %p33, 0, %s32
      %s35 = ssub.s32 %s23, %s30
      %p36 = scmp.eq.s32.totalorder %s35, 0
      %s38 = sadd.s32 %s37, 1
      %s39 = scalar_select %p36, %s37, %s38
      %p42 = pneg %p36
      %p43 = scmp.eq.s32.totalorder %s15, 3
      %p44 = por %p42, %p43
      %p45 = scmp.ne.s32.totalorder %s37, %s40
      %p46 = scmp.eq.s32.totalorder %s15, 0
      %p47 = por %p45, %p46
      %p48 = scmp.ne.s32.totalorder %s37, %s40
      %p49 = scmp.eq.s32.totalorder %s20, 3
      %p50 = por %p48, %p49
      %p51 = scmp.ne.s32.totalorder %s40, %s41
      %p52 = scmp.eq.s32.totalorder %s20, 0
      %p53 = por %p51, %p52
      %p54 = scmp.ne.s32.totalorder %s40, %s41
      %p55 = scmp.eq.s32.totalorder %s21, 3
      %p56 = por %p54, %p55
      %p58 = scmp.ne.s32.totalorder %s41, %s57
      %p59 = scmp.eq.s32.totalorder %s21, 0
      %p60 = por %p58, %p59
      %s61 = ssub.s32 %s23, %s30
      %p62 = scmp.eq.s32.totalorder %s61, 0
      %s64 = sadd.s32 %s63, 1
      %s65 = scalar_select %p62, %s63, %s64
      %p68 = pneg %p62
      %p69 = scmp.eq.s32.totalorder %s15, 3
      %p70 = por %p68, %p69
      %p71 = scmp.ne.s32.totalorder %s63, %s66
      %p72 = scmp.eq.s32.totalorder %s15, 0
      %p73 = por %p71, %p72
      %p74 = scmp.ne.s32.totalorder %s63, %s66
      %p75 = scmp.eq.s32.totalorder %s20, 3
      %p76 = por %p74, %p75
      %p77 = scmp.ne.s32.totalorder %s66, %s67
      %p78 = scmp.eq.s32.totalorder %s20, 0
      %p79 = por %p77, %p78
      %p80 = scmp.ne.s32.totalorder %s66, %s67
      %p81 = scmp.eq.s32.totalorder %s21, 3
      %p82 = por %p80, %p81
      %p84 = scmp.ne.s32.totalorder %s67, %s83
      %p85 = scmp.eq.s32.totalorder %s21, 0
      %p86 = por %p84, %p85
      %s87 = ssub.s32 %s23, %s30
      %p88 = scmp.eq.s32.totalorder %s87, 0
      %s90 = sadd.s32 %s89, 1
      %s91 = scalar_select %p88, %s89, %s90
      %p94 = pneg %p88
      %p95 = scmp.eq.s32.totalorder %s15, 3
      %p96 = por %p94, %p95
      %p97 = scmp.ne.s32.totalorder %s89, %s92
      %p98 = scmp.eq.s32.totalorder %s15, 0
      %p99 = por %p97, %p98
      %p100 = scmp.ne.s32.totalorder %s89, %s92
      %p101 = scmp.eq.s32.totalorder %s20, 3
      %p102 = por %p100, %p101
      %p103 = scmp.ne.s32.totalorder %s92, %s93
      %p104 = scmp.eq.s32.totalorder %s20, 0
      %p105 = por %p103, %p104
      %p106 = scmp.ne.s32.totalorder %s92, %s93
      %p107 = scmp.eq.s32.totalorder %s21, 3
      %p108 = por %p106, %p107
      %p110 = scmp.ne.s32.totalorder %s93, %s109
      %p111 = scmp.eq.s32.totalorder %s21, 0
      %p112 = por %p110, %p111
      %s114 = sadd.s32 %s113, 1
      %p117 = scmp.eq.s32.totalorder %s15, 3
      %p118 = scmp.ne.s32.totalorder %s113, %s115
      %p119 = scmp.eq.s32.totalorder %s15, 0
      %p120 = por %p118, %p119
      %p121 = scmp.ne.s32.totalorder %s113, %s115
      %p122 = scmp.eq.s32.totalorder %s20, 3
      %p123 = por %p121, %p122
      %p124 = scmp.ne.s32.totalorder %s115, %s116
      %p125 = scmp.eq.s32.totalorder %s20, 0
      %p126 = por %p124, %p125
      %p127 = scmp.ne.s32.totalorder %s115, %s116
      %p128 = scmp.eq.s32.totalorder %s21, 3
      %p129 = por %p127, %p128
      %p131 = scmp.ne.s32.totalorder %s116, %s130
      %p132 = scmp.eq.s32.totalorder %s21, 0
      %p133 = por %p131, %p132
      %s135 = sadd.s32 %s134, 1
      %p138 = scmp.eq.s32.totalorder %s15, 3
      %p139 = scmp.ne.s32.totalorder %s134, %s136
      %p140 = scmp.eq.s32.totalorder %s15, 0
      %p141 = por %p139, %p140
      %p142 = scmp.ne.s32.totalorder %s134, %s136
      %p143 = scmp.eq.s32.totalorder %s20, 3
      %p144 = por %p142, %p143
      %p145 = scmp.ne.s32.totalorder %s136, %s137
      %p146 = scmp.eq.s32.totalorder %s20, 0
      %p147 = por %p145, %p146
      %p148 = scmp.ne.s32.totalorder %s136, %s137
      %p149 = scmp.eq.s32.totalorder %s21, 3
      %p150 = por %p148, %p149
      %p152 = scmp.ne.s32.totalorder %s137, %s151
      %p153 = scmp.eq.s32.totalorder %s21, 0
      %p154 = por %p152, %p153
      %s156 = sadd.s32 %s155, 1
      %p159 = scmp.eq.s32.totalorder %s15, 3
      %p160 = scmp.ne.s32.totalorder %s155, %s157
      %p161 = scmp.eq.s32.totalorder %s15, 0
      %p162 = por %p160, %p161
      %p163 = scmp.ne.s32.totalorder %s155, %s157
      %p164 = scmp.eq.s32.totalorder %s20, 3
      %p165 = por %p163, %p164
      %p166 = scmp.ne.s32.totalorder %s157, %s158
      %p167 = scmp.eq.s32.totalorder %s20, 0
      %p168 = por %p166, %p167
      %p169 = scmp.ne.s32.totalorder %s157, %s158
      %p170 = scmp.eq.s32.totalorder %s21, 3
      %p171 = por %p169, %p170
      %p173 = scmp.ne.s32.totalorder %s158, %s172
      %p174 = scmp.eq.s32.totalorder %s21, 0
      %p175 = por %p173, %p174
      %s176 = smul.u32 %s23, %s22
      %s177 = smul.u32 %s30, %s34
      %s178 = ssub.s32 %s176, %s177
      %p179 = scmp.eq.s32.totalorder %s178, 0
      %s181 = sadd.s32 %s180, 1
      %s182 = scalar_select %p179, %s180, %s181
      %p185 = pneg %p179
      %p186 = scmp.eq.s32.totalorder %s15, 3
      %p187 = por %p185, %p186
      %p188 = scmp.ne.s32.totalorder %s180, %s183
      %p189 = scmp.eq.s32.totalorder %s15, 0
      %p190 = por %p188, %p189
      %p191 = scmp.ne.s32.totalorder %s180, %s183
      %p192 = scmp.eq.s32.totalorder %s20, 3
      %p193 = por %p191, %p192
      %p194 = scmp.ne.s32.totalorder %s183, %s184
      %p195 = scmp.eq.s32.totalorder %s20, 0
      %p196 = por %p194, %p195
      %p197 = scmp.ne.s32.totalorder %s183, %s184
      %p198 = scmp.eq.s32.totalorder %s21, 3
      %p199 = por %p197, %p198
      %p201 = scmp.ne.s32.totalorder %s184, %s200
      %p202 = scmp.eq.s32.totalorder %s21, 0
      %p203 = por %p201, %p202
      %p204 = scmp.le.s32.totalorder 1, %s15
      %p205 = scmp.lt.s32.totalorder %s15, 5
      %p206 = pnand %p204, %p205
      %p207 = pneg %p206
      // Predicated region
      $region9: #{tpu_custom_call.1} parent=5 // pred_check
        _
      $region10: #{tpu_custom_call.1} parent=5 // pred_check_branch
        %209 = sbr.rel (%p206) target = $region12
      $region11: #{tpu_custom_call.1} parent=5 // pred_region
        %s210 = ssub.s32 %s15, 1
        // Predicated region
        $region13: #{tpu_custom_call.1} parent=11 // pred_check
          %p211 = pneg %p126
        $region14: #{tpu_custom_call.1} parent=11 // pred_check_branch
          %213 = sbr.rel (%p211) target = $region16
        $region15: #{tpu_custom_call.1} parent=11 // pred_region
          _
        $region16: #{tpu_custom_call.1} parent=11 // pred_fallthru
          _
        // Predicated region
        $region17: #{tpu_custom_call.1} parent=11 // pred_check
          %p214 = pneg %p147
        $region18: #{tpu_custom_call.1} parent=11 // pred_check_branch
          %216 = sbr.rel (%p214) target = $region20
        $region19: #{tpu_custom_call.1} parent=11 // pred_region
          _
        $region20: #{tpu_custom_call.1} parent=11 // pred_fallthru
          _
        // Predicated region
        $region21: #{tpu_custom_call.1} parent=11 // pred_check
          %p217 = pneg %p168
        $region22: #{tpu_custom_call.1} parent=11 // pred_check_branch
          %219 = sbr.rel (%p217) target = $region24
        $region23: #{tpu_custom_call.1} parent=11 // pred_region
          _
        $region24: #{tpu_custom_call.1} parent=11 // pred_fallthru
          _
      $region12: #{tpu_custom_call.1} parent=5 // pred_fallthru
        _
      %p220 = scmp.lt.s32.totalorder %s15, 4
      // Predicated region
      $region25: #{tpu_custom_call.1} parent=5 // pred_check
        %p221 = pneg %p220
      $region26: #{tpu_custom_call.1} parent=5 // pred_check_branch
        %223 = sbr.rel (%p221) target = $region28
      $region27: #{tpu_custom_call.1} parent=5 // pred_region
        // Predicated region
        $region29: #{tpu_custom_call.1} parent=27 // pred_check
          %p224 = pneg %p47
        $region30: #{tpu_custom_call.1} parent=27 // pred_check_branch
          %226 = sbr.rel (%p224) target = $region32
        $region31: #{tpu_custom_call.1} parent=27 // pred_region
          %p227 = scmp.lt.s32.totalorder %s23, 1
          %s228 = scalar_select %p227, %s23, 1
          %s229 = smul.addr %s228, 8
          %s230 = scalar_lea.vmem %s0, %s229
        $region32: #{tpu_custom_call.1} parent=27 // pred_fallthru
          _
        // Predicated region
        $region33: #{tpu_custom_call.1} parent=27 // pred_check
          %p231 = pneg %p73
        $region34: #{tpu_custom_call.1} parent=27 // pred_check_branch
          %233 = sbr.rel (%p231) target = $region36
        $region35: #{tpu_custom_call.1} parent=27 // pred_region
          %p234 = scmp.lt.s32.totalorder %s23, 1
          %s235 = scalar_select %p234, %s23, 1
          %s236 = smul.addr %s235, 8
          %s237 = scalar_lea.vmem %s1, %s236
        $region36: #{tpu_custom_call.1} parent=27 // pred_fallthru
          _
        // Predicated region
        $region37: #{tpu_custom_call.1} parent=27 // pred_check
          %p238 = pneg %p99
        $region38: #{tpu_custom_call.1} parent=27 // pred_check_branch
          %240 = sbr.rel (%p238) target = $region40
        $region39: #{tpu_custom_call.1} parent=27 // pred_region
          %p241 = scmp.lt.s32.totalorder %s23, 1
          %s242 = scalar_select %p241, %s23, 1
          %s243 = smul.addr %s242, 8
          %s244 = scalar_lea.vmem %s2, %s243
        $region40: #{tpu_custom_call.1} parent=27 // pred_fallthru
          _
      $region28: #{tpu_custom_call.1} parent=5 // pred_fallthru
        _
      %p245 = scmp.le.s32.totalorder 1, %s15
      %p246 = scmp.lt.s32.totalorder %s15, 5
      %p247 = pnand %p245, %p246
      %p248 = pneg %p247
      // Predicated region
      $region41: #{tpu_custom_call.1} parent=5 // pred_check
        _
      $region42: #{tpu_custom_call.1} parent=5 // pred_check_branch
        %250 = sbr.rel (%p247) target = $region44
      $region43: #{tpu_custom_call.1} parent=5 // pred_region
        %s251 = ssub.s32 %s15, 1
        %p252 = scmp.lt.s32.totalorder %s25, 1
        %s253 = scalar_select %p252, %s25, 1
        %s254 = smul.addr %s253, 8
        %s255 = scalar_lea.vmem %s0, %s254
        %p256 = pneg %p53
        %p257 = pneg %p50
        %p258 = scmp.lt.s32.totalorder %s25, 1
        %s259 = scalar_select %p258, %s25, 1
        %s260 = smul.addr %s259, 8
        %s261 = scalar_lea.vmem %s1, %s260
        %p262 = pneg %p79
        %p263 = pneg %p76
        %p264 = scmp.lt.s32.totalorder %s25, 1
        %s265 = scalar_select %p264, %s25, 1
        %s266 = smul.addr %s265, 8
        %s267 = scalar_lea.vmem %s2, %s266
        %p268 = pneg %p105
        %p269 = pneg %p102
        %p270 = pneg %p126
        %p271 = pneg %p123
        %p272 = pneg %p147
        %p273 = pneg %p144
        %p274 = pneg %p168
        %p275 = pneg %p165
        %p276 = pneg %p196
        %p277 = pneg %p193
        %s278 = sand.u32 %s183, 1
        %s279 = scalar_lea.sflag [#allocation5], %s278
        %s280 = sand.u32 %s183, 1
        %s281 = smul.addr %s280, 8
        %s282 = scalar_lea.vmem [#allocation4], %s281
        %p283 = scmp.lt.s32.totalorder %s25, 1
        %s284 = scalar_select %p283, %s25, 1
        %s285 = smul.addr %s284, 8
        %s286 = scalar_lea.vmem %s0, %s285
        %p287 = scmp.lt.s32.totalorder %s25, 1
        %s288 = scalar_select %p287, %s25, 1
        %s289 = smul.addr %s288, 8
        %s290 = scalar_lea.vmem %s1, %s289
        %p291 = scmp.lt.s32.totalorder %s25, 1
        %s292 = scalar_select %p291, %s25, 1
        %s293 = smul.addr %s292, 8
        %s294 = scalar_lea.vmem %s2, %s293
        %s295 = smul.u32 %s25, %s24
        %v296 = vld [vmem:[%s286] sm:$0xff]
        %v297 = vld [vmem:[%s290] sm:$0xff]
        %v298 = vmul.f32 %v296, %v297
        %v299 = vld [vmem:[%s294] sm:$0xff]
        %v300 = vmul.f32 %v296, %v299
        %v301 = vld [vmem:[%s3] sm:$0xff]
        %v302 = vld [vmem:[%s3 + $0x8] sm:$0xff]
        %v303 = vld [vmem:[%s3 + $0x10] sm:$0xff]
        %v304 = vld [vmem:[%s4] sm:$0xff]
        %v305 = vld [vmem:[%s4 + $0x8] sm:$0xff]
        %v306 = vld [vmem:[%s4 + $0x10] sm:$0xff]
        %vm307 = vcmask 64512
        %v309 = vsel %vm307, %v304, 0
        %v312 = vsel %vm307, %v305, 0
        %v315 = vsel %vm307, %v306, 0
        %317 = vmatpush.msra.mxu0 0.0
        %318 = vmatpush.msra.mxu0 0.0
        %319 = vmatpush.msra.mxu0 0.0
        %320 = vmatpush.msra.mxu0 0.0
        %321 = vmatpush.msra.mxu0 0.0
        %322 = vmatpush.msra.mxu0 0.0
        %323 = vmatpush.msra.mxu0 0.0
        %324 = vmatpush.msra.mxu0 0.0
        %325 = vmatpush.msra.mxu0 0.0
        %326 = vmatpush.msra.mxu0 0.0
        %327 = vmatpush.msra.mxu0 0.0
        %328 = vmatpush.msra.mxu0 0.0
        %329 = vmatpush.msra.mxu0 0.0
        %330 = vmatpush.msra.mxu0 0.0
        %331 = vmatpush.msra.mxu0 0.0
        %332 = vmatpush.msra.mxu0 %v300
        %333 = vmatmul.f32.gmra.mxu0 %v309
        %v334 = vpop.f32.mrf.mxu0
        %v335 = vadd.f32 0.0, %v334
        %336 = vmatmul.f32.gmra.mxu0 %v312
        %v337 = vpop.f32.mrf.mxu0
        %v338 = vadd.f32 0.0, %v337
        %339 = vmatmul.f32.gmra.mxu0 %v315
        %v340 = vpop.f32.mrf.mxu0
        %v341 = vadd.f32 0.0, %v340
        %342 = vdwg.mxu0
        %v344 = vsel %vm307, %v301, 0
        %v347 = vsel %vm307, %v302, 0
        %v350 = vsel %vm307, %v303, 0
        %352 = vmatpush.msra.mxu0 0.0
        %353 = vmatpush.msra.mxu0 0.0
        %354 = vmatpush.msra.mxu0 0.0
        %355 = vmatpush.msra.mxu0 0.0
        %356 = vmatpush.msra.mxu0 0.0
        %357 = vmatpush.msra.mxu0 0.0
        %358 = vmatpush.msra.mxu0 0.0
        %359 = vmatpush.msra.mxu0 0.0
        %360 = vmatpush.msra.mxu0 0.0
        %361 = vmatpush.msra.mxu0 0.0
        %362 = vmatpush.msra.mxu0 0.0
        %363 = vmatpush.msra.mxu0 0.0
        %364 = vmatpush.msra.mxu0 0.0
        %365 = vmatpush.msra.mxu0 0.0
        %366 = vmatpush.msra.mxu0 0.0
        %367 = vmatpush.msra.mxu0 %v298
        %368 = vmatmul.f32.gmra.mxu0 %v344
        %v369 = vpop.f32.mrf.mxu0
        %v370 = vadd.f32 %v335, %v369
        %371 = vmatmul.f32.gmra.mxu0 %v347
        %v372 = vpop.f32.mrf.mxu0
        %v373 = vadd.f32 %v338, %v372
        %374 = vmatmul.f32.gmra.mxu0 %v350
        %v375 = vpop.f32.mrf.mxu0
        %v376 = vadd.f32 %v341, %v375
        %377 = vdwg.mxu0
        %v378 = vlaneseq
        %v379 = vand.u32 %v378, 127
        %vm380 = vcmp.eq.s32.totalorder %v379, 0
        %381 = vrot.lane.b32.xlu0 %v370, 1
        %v382 = vpop.permute.xlu0 %381
        %v383 = vsel %vm380, 0.0, %v382
        %v384 = vadd.f32 %v373, %v383
        %vm385 = vcmp.eq.s32.totalorder %v379, 127
        %386 = vrot.lane.b32.xlu0 %v376, 127
        %v387 = vpop.permute.xlu0 %386
        %v388 = vsel %vm385, 0.0, %v387
        %v389 = vadd.f32 %v384, %v388
        %p390 = scmp.eq.s32.totalorder %s24, 0
        // Predicated region
        $region45: #{tpu_custom_call.1} parent=43 // pred_check
          %p391 = pneg %p390
        $region46: #{tpu_custom_call.1} parent=43 // pred_check_branch
          %393 = sbr.rel (%p391) target = $region48
        $region47: #{tpu_custom_call.1} parent=43 // pred_region
          %p394 = scmp.eq.s32.totalorder %s25, 0
          // Predicated region
          $region49: #{tpu_custom_call.1} parent=47 // pred_check
            %p395 = pneg %p394
          $region50: #{tpu_custom_call.1} parent=47 // pred_check_branch
            %397 = sbr.rel (%p395) target = $region52
          $region51: #{tpu_custom_call.1} parent=47 // pred_region
            %vm398 = vcmask 7168
            %399 = vst.msk [vmem:[#allocation2] sm:$0xff] %vm398, 0.0
            %400 = vst.msk [vmem:[#allocation3] sm:$0xff] %vm398, 0.0
          $region52: #{tpu_custom_call.1} parent=47 // pred_fallthru
            _
          %v401 = vld [vmem:[#allocation2] sm:$0xff]
          %402 = vadd.xlane.f32.xlu0 %v389
          %v403 = vpop.xlane.xlu0 %402
          %v404 = vadd.f32 %v401, %v403
          %vm405 = vcmask 7168
          %406 = vst.msk [vmem:[#allocation2] sm:$0xff] %vm405, %v404
          %v407 = vld [vmem:[#allocation3] sm:$0xff]
          %v408 = vmul.f32 %v389, %v389
          %409 = vadd.xlane.f32.xlu0 %v408
          %v410 = vpop.xlane.xlu0 %409
          %v411 = vadd.f32 %v407, %v410
          %412 = vst.msk [vmem:[#allocation3] sm:$0xff] %vm405, %v411
        $region48: #{tpu_custom_call.1} parent=43 // pred_fallthru
          _
        %p413 = scmp.eq.s32.totalorder %s24, 1
        // Predicated region
        $region53: #{tpu_custom_call.1} parent=43 // pred_check
          %p414 = pneg %p413
        $region54: #{tpu_custom_call.1} parent=43 // pred_check_branch
          %416 = sbr.rel (%p414) target = $region56
        $region55: #{tpu_custom_call.1} parent=43 // pred_region
          %p417 = scmp.eq.s32.totalorder %s25, 0
          // Predicated region
          $region57: #{tpu_custom_call.1} parent=55 // pred_check
            %p418 = pneg %p417
          $region58: #{tpu_custom_call.1} parent=55 // pred_check_branch
            %420 = sbr.rel (%p418) target = $region60
          $region59: #{tpu_custom_call.1} parent=55 // pred_region
            %v421 = vld [vmem:[#allocation2] sm:$0xff]
            %v422 = vmul.f32 %v421, 0.00390625
            %v423 = vld [vmem:[#allocation3] sm:$0xff]
            %v424 = vmul.f32 %v423, 0.00390625
            %v425 = vmul.f32 %v422, %v422
            %v426 = vsub.f32 %v424, %v425
            %v427 = vmax.f32 %v426, 0.0
            %v428 = vadd.f32 %v427, 1e-05
            %v429 = vrsqrt.pop %v428
            %v430 = vmul.f32 %v429, %v428
            %v431 = vmul.f32 %v430, %v429
            %v432 = vmul.f32 0.5, %v431
            %v433 = vsub.f32 1.5, %v432
            %v434 = vmul.f32 %v429, %v433
            %vm435 = vweird.f32 %v428
            %vm436 = vweird.f32 %v429
            %vm437 = vmor %vm435, %vm436
            %v438 = vsel %vm437, %v429, %v434
            %v439 = vld [vmem:[%s5] sm:$0xff]
            %v440 = vmul.f32 %v438, %v439
            %vm441 = vcmask 7168
            %442 = vst.msk [vmem:[#allocation2] sm:$0xff] %vm441, %v440
            %v443 = vld [vmem:[%s5] sm:$0xff]
            %v444 = vmul.f32 %v422, %v440
            %446 = vrot.lane.b32.xlu0 %v444, 1
            %v447 = vpop.permute.xlu0 %446
            %v449 = vsub.f32 %v443, %v447
            %451 = vrot.lane.b32.xlu0 %v449, 127
            %v452 = vpop.permute.xlu0 %451
            %454 = vst.msk [vmem:[#allocation3] sm:$0xff] %vm441, %v452
          $region60: #{tpu_custom_call.1} parent=55 // pred_fallthru
            _
          %v455 = vld [vmem:[#allocation2] sm:$0xff]
          %457 = vset.pattern.permute.xlu0 0
          %458 = vperm.xlu0 %457, %v455
          %v459 = vpop.permute.xlu0 %458
          %v461 = vmul.f32 %v389, %v459
          %v462 = vadd.f32 %v296, %v461
          %v463 = vld [vmem:[#allocation3] sm:$0xff]
          %465 = vset.pattern.permute.xlu0 0
          %466 = vperm.xlu0 %465, %v463
          %v467 = vpop.permute.xlu0 %466
          %v469 = vadd.f32 %v462, %v467
          %v470 = vmax.f32 %v469, 0.0
          %471 = vst [vmem:[%s282] sm:$0xff] %v470
        $region56: #{tpu_custom_call.1} parent=43 // pred_fallthru
          _
        %s472 = sand.u32 %s183, 1
        %s473 = scalar_lea.sflag [#allocation5], %s472
        %s474 = sand.u32 %s183, 1
        %s475 = smul.addr %s474, 8
        %s476 = scalar_lea.vmem [#allocation4], %s475
        // Predicated region
        $region61: #{tpu_custom_call.1} parent=43 // pred_check
          %p477 = pneg %p193
        $region62: #{tpu_custom_call.1} parent=43 // pred_check_branch
          %479 = sbr.rel (%p477) target = $region64
        $region63: #{tpu_custom_call.1} parent=43 // pred_region
          %s480 = smul.u32 %s25, %s24
          %482 = vsyncadd %s473, 0
          %s483 = smul.addr %s480, 8
          %s484 = scalar_lea.hbm %s6, %s483
          %s486 = sshll.u32 %s476, 4
          %s487 = int_to_ptr.vmem [resolvable:$true] %s486
          %s488 = sshll.u32 %s484, 4
          %s489 = int_to_ptr.hbm [resolvable:$true] %s488
          %491 = dma.vmem_to_hbm [thread:$0]  %s487, 128, %s489, %s473
        $region64: #{tpu_custom_call.1} parent=43 // pred_fallthru
          _
      $region44: #{tpu_custom_call.1} parent=5 // pred_fallthru
        _
      %p492 = scmp.le.s32.totalorder 2, %s15
      // Predicated region
      $region65: #{tpu_custom_call.1} parent=5 // pred_check
        %p493 = pneg %p492
      $region66: #{tpu_custom_call.1} parent=5 // pred_check_branch
        %495 = sbr.rel (%p493) target = $region68
      $region67: #{tpu_custom_call.1} parent=5 // pred_region
        %s496 = ssub.s32 %s15, 2
        // Predicated region
        $region69: #{tpu_custom_call.1} parent=67 // pred_check
          %p497 = pneg %p199
        $region70: #{tpu_custom_call.1} parent=67 // pred_check_branch
          %499 = sbr.rel (%p497) target = $region72
        $region71: #{tpu_custom_call.1} parent=67 // pred_region
          %s500 = sand.u32 %s184, 1
          %s501 = scalar_lea.sflag [#allocation5], %s500
          %s502 = sand.u32 %s184, 1
          %s503 = smul.addr %s502, 8
          %s504 = scalar_lea.vmem [#allocation4], %s503
          %506 = dma.done %s501, 128
        $region72: #{tpu_custom_call.1} parent=67 // pred_fallthru
          _
      $region68: #{tpu_custom_call.1} parent=5 // pred_fallthru
        _
    $region6: #{tpu_custom_call.1} parent=1 // loop_footer
      %s19 = sadd.s32 1, %s15
    $region7: #{tpu_custom_call.1} parent=1 // loop_footer_branch
      %14 = sbr.rel target = $region3
    $region8: #{tpu_custom_call.1} parent=1 // loop_exit
      _
    %507 = vsyncpa [#allocation5], 1
    %s508 = scalar_lea.sflag [#allocation5], 1
    %509 = vsyncpa %s508, 1

</llo_original>
